<compile_context>
chip_gen: v6e
topology: v6e:2x2x1
jax: 0.10.0
libtpu: 0.0.40
codegen_flags: <defaults>
</compile_context>

<pallas_src>
import jax
import jax.numpy as jnp
from jax import lax
from jax.experimental import pallas as pl
from jax.experimental.pallas import tpu as pltpu


def _make_wkldiv_kernel(tb, Cp, B, C, mask_rows, mask_cols):
    """Per-block partial sums of p * (log(p + eps) - q), folded to (8, Cp)."""

    def kernel(q_ref, p_ref, o_ref):
        p = p_ref[...].astype(jnp.float32)
        q = q_ref[...].astype(jnp.float32)
        contrib = p * (jnp.log(p + 1e-12) - q)

        # Trailing-block masking (only emitted when shapes are ragged).
        # The overhang region of the VMEM tile holds unspecified data; it is
        # selected away before it can contribute (NaN/Inf in the discarded
        # branch of where() does not propagate).
        if mask_rows or mask_cols:
            mask = None
            if mask_rows:
                row0 = pl.program_id(0) * tb
                rows = row0 + lax.broadcasted_iota(jnp.int32, (tb, Cp), 0)
                mask = rows < B
            if mask_cols:
                cols = lax.broadcasted_iota(jnp.int32, (tb, Cp), 1)
                cmask = cols < C
                mask = cmask if mask is None else (mask & cmask)
            contrib = jnp.where(mask, contrib, 0.0)

        # Layout-preserving split of the sublane axis into groups of 8 and sum
        # over the leading group axis: pure elementwise VPU adds.
        o_ref[...] = contrib.reshape(tb // 8, 8, Cp).sum(axis=0)

    return kernel


def wkldiv(q_logit, p, *, target_tile_bytes=2 << 20):
    """mean_over_rows( sum_over_cols( p * (log(p + 1e-12) - q_logit) ) )."""
    B, C = q_logit.shape
    assert p.shape == (B, C)

    # Lane-dense class axis (blocks may overhang C; masked in-kernel).
    Cp = max(128, pl.cdiv(C, 128) * 128)

    # Row alignment respects the packed sublane tiling of both input dtypes
    # (8 rows for 32-bit, 16 for bf16, 32 for int8/fp8).
    row_align = max(
        8,
        32 // q_logit.dtype.itemsize,
        32 // p.dtype.itemsize,
    )

    # Pick tb so each input tile is ~target_tile_bytes (big tiles amortize the
    # ~0.35us per-grid-step pipeline overhead; this kernel is memory-bound).
    bytes_per_row = Cp * max(q_logit.dtype.itemsize, p.dtype.itemsize)
    tb = max(row_align, (target_tile_bytes // bytes_per_row) // row_align * row_align)
    b_aligned = pl.cdiv(B, row_align) * row_align
    tb = min(tb, b_aligned)

    num_blocks = pl.cdiv(B, tb)

    # Static flags: only the ragged paths pay for the mask (and it is cheap
    # VPU work hidden under the DMA anyway).
    mask_rows = (num_blocks * tb) != B
    mask_cols = Cp != C

    # Explicit VMEM budget: double-buffered inputs + outputs + slack for
    # elementwise f32 temporaries. Floor of 32 MiB raises v5e's 16 MiB default
    # while staying within v7x's 64 MiB physical VMEM for realistic C.
    in_tile_bytes = tb * Cp * (q_logit.dtype.itemsize + p.dtype.itemsize)
    out_tile_bytes = 8 * Cp * 4
    vmem_limit = int(
        max(32 << 20, 2 * in_tile_bytes + 2 * out_tile_bytes + 3 * tb * Cp * 4 + (4 << 20))
    )

    kernel = _make_wkldiv_kernel(tb, Cp, B, C, mask_rows, mask_cols)

    partials = pl.pallas_call(
        kernel,
        out_shape=jax.ShapeDtypeStruct((num_blocks * 8, Cp), jnp.float32),
        grid=(num_blocks,),
        in_specs=[
            pl.BlockSpec((tb, Cp), lambda i: (i, 0)),
            pl.BlockSpec((tb, Cp), lambda i: (i, 0)),
        ],
        out_specs=pl.BlockSpec((8, Cp), lambda i: (i, 0)),
        compiler_params=pltpu.CompilerParams(
            dimension_semantics=("parallel",),
            vmem_limit_bytes=vmem_limit,
        ),
    )(q_logit, p)

    # Tiny final reduction (partials are ~tb/8 x smaller than the inputs);
    # mean over the ORIGINAL batch size.
    return jnp.sum(partials) / jnp.float32(B)


if __name__ == "__main__":
    key = jax.random.PRNGKey(0)
    k1, k2 = jax.random.split(key)

    B, C = 16, 256
    q_logit = jax.random.normal(k1, (B, C), dtype=jnp.float32)
    # p is a probability-like tensor (softmax keeps it positive, rows sum to 1)
    p = jax.nn.softmax(jax.random.normal(k2, (B, C), dtype=jnp.float32), axis=-1)

    out = wkldiv(q_logit, p)
    out = jax.block_until_ready(out)

    # Reference (plain JAX, mirrors the PyTorch forward exactly).
    ref = jnp.mean(jnp.sum(p * (jnp.log(p + 1e-12) - q_logit), axis=1))
    assert jnp.allclose(out, ref, rtol=1e-5, atol=1e-5), (out, ref)

    # Also check the ragged / masked (in-kernel) shape path.
    B2, C2 = 10, 200
    q2 = jax.random.normal(k1, (B2, C2), dtype=jnp.float32)
    p2 = jax.nn.softmax(jax.random.normal(k2, (B2, C2), dtype=jnp.float32), axis=-1)
    out2 = jax.block_until_ready(wkldiv(q2, p2))
    ref2 = jnp.mean(jnp.sum(p2 * (jnp.log(p2 + 1e-12) - q2), axis=1))
    assert jnp.allclose(out2, ref2, rtol=1e-5, atol=1e-5), (out2, ref2)

    print("KERNEL_OK")
</pallas_src>

<mosaic_0001>
module attributes {stable_mosaic.version = 11 : i64} {
  func.func @kernel(%arg0: i32, %arg1: memref<16x256xf32, #tpu.memory_space<vmem>>, %arg2: memref<16x256xf32, #tpu.memory_space<vmem>>, %arg3: memref<8x256xf32, #tpu.memory_space<vmem>>) attributes {dimension_semantics = [#tpu.dimension_semantics<parallel>], iteration_bounds = array<i64: 1>, scalar_prefetch = 0 : i64, scratch_operands = 0 : i64, tpu.core_type = #tpu.core_type<tc>, window_params = [{transform_indices = @transform_0, window_bounds = array<i64: 16, 256>}, {transform_indices = @transform_1, window_bounds = array<i64: 16, 256>}, {transform_indices = @transform_2, window_bounds = array<i64: 8, 256>}]} {
    %c0 = arith.constant 0 : index
    %c0_0 = arith.constant 0 : index
    %0 = vector.load %arg2[%c0, %c0_0] : memref<16x256xf32, #tpu.memory_space<vmem>>, vector<16x256xf32>
    %c0_1 = arith.constant 0 : index
    %c0_2 = arith.constant 0 : index
    %1 = vector.load %arg1[%c0_1, %c0_2] : memref<16x256xf32, #tpu.memory_space<vmem>>, vector<16x256xf32>
    %cst = arith.constant 9.99999996E-13 : f32
    %2 = vector.broadcast %cst : f32 to vector<16x256xf32>
    %3 = arith.addf %0, %2 : vector<16x256xf32>
    %4 = math.log %3 : vector<16x256xf32>
    %5 = arith.subf %4, %1 : vector<16x256xf32>
    %6 = arith.mulf %0, %5 : vector<16x256xf32>
    %7 = vector.shape_cast %6 : vector<16x256xf32> to vector<2x8x256xf32>
    %cst_3 = arith.constant dense<0.000000e+00> : vector<8x256xf32>
    %8 = vector.multi_reduction <add>, %7, %cst_3 [0] : vector<2x8x256xf32> to vector<8x256xf32>
    %c0_4 = arith.constant 0 : index
    %c0_5 = arith.constant 0 : index
    %9 = vector.load %arg3[%c0_4, %c0_5] : memref<8x256xf32, #tpu.memory_space<vmem>>, vector<8x256xf32>
    tpu.vector_store %arg3[%c0_4, %c0_5], %8 {strides = array<i32>} : memref<8x256xf32, #tpu.memory_space<vmem>>, vector<8x256xf32>,
    return
  }
  func.func @transform_0(%arg0: i32) -> (i32, i32) {
    %c0_i32 = arith.constant 0 : i32
    %c0_i32_0 = arith.constant 0 : i32
    return %arg0, %c0_i32 : i32, i32
  }
  func.func @transform_1(%arg0: i32) -> (i32, i32) {
    %c0_i32 = arith.constant 0 : i32
    %c0_i32_0 = arith.constant 0 : i32
    return %arg0, %c0_i32 : i32, i32
  }
  func.func @transform_2(%arg0: i32) -> (i32, i32) {
    %c0_i32 = arith.constant 0 : i32
    %c0_i32_0 = arith.constant 0 : i32
    return %arg0, %c0_i32 : i32, i32
  }
}

</mosaic_0001>

<llo_original>
// kernel: tpu_custom_call.1
$region0: #{tpu_custom_call.1}
  #allocation0 [shape = 'u32[]', space=smem, size = 0x4, offset = 0x4, fixed_abs, tag = 'smem constant byte address 0x4 - core index']
  #allocation1 [shape = 'u32[144,128]{1,0:T(1,128)}', space=vmem, size = 0x12000, scoped, tag = 'internal scratch']
  %s0 = inlined_call_operand.hbm [shape: f32[16,256], index: 0, kind: input, shape index: {}]
  %s1 = inlined_call_operand.hbm [shape: f32[16,256], index: 1, kind: input, shape index: {}]
  %s2 = inlined_call_operand.hbm [shape: f32[8,256], index: 2, kind: output, shape index: {}]
  %s3 = sld [smem:[#allocation0]]
  $region26: #{tpu_custom_call.1} parent=0
    _
  %s5 = ssub.s32 1, %s3
  %s6 = scalar_select 0, %s5, %s3
  $region1: #{tpu_custom_call.1} parent=0
    #allocation2 [shape = 'u8[16384]{0}', space=vmem, size = 0x4000, scoped, tag = 'input window, operand 0, single buffered']
    #allocation3 [shape = 's32[1]{0}', space=sflag, size = 0x4, scoped, tag = 'scoped memory for tpu_custom_call.1']
    #allocation4 [shape = 's32[1]{0}', space=sflag, size = 0x4, scoped, tag = 'scoped memory for tpu_custom_call.1']
    #allocation5 [shape = 'u8[16384]{0}', space=vmem, size = 0x4000, scoped, tag = 'input window, operand 1, single buffered']
    #allocation6 [shape = 's32[1]{0}', space=sflag, size = 0x4, scoped, tag = 'scoped memory for tpu_custom_call.1']
    #allocation7 [shape = 'u8[8192]{0}', space=vmem, size = 0x2000, scoped, tag = 'output window, operand 0, single buffered']
    %7 = vsyncpa [#allocation3], 0
    %8 = vsyncpa [#allocation6], 0
    %9 = vsyncpa [#allocation4], 0
    // Predicated region
    $region2: #{tpu_custom_call.1} parent=1 // pred_check
      _
    $region3: #{tpu_custom_call.1} parent=1 // pred_check_branch
      %11 = sbr.rel (0) target = $region5
    $region4: #{tpu_custom_call.1} parent=1 // pred_region
      %s13 = ssub.s32 512, 512
      %14 = vsyncadd [#allocation3], %s13
      %s15 = sshll.u32 [#allocation2], 4
      %s16 = int_to_ptr.vmem [resolvable:$true] %s15
      %21 = dma.hbm_to_vmem [thread:$0]  %s0, 512, %s16, [#allocation3], 256, 256, 16
    $region5: #{tpu_custom_call.1} parent=1 // pred_fallthru
      _
    // Predicated region
    $region6: #{tpu_custom_call.1} parent=1 // pred_check
      _
    $region7: #{tpu_custom_call.1} parent=1 // pred_check_branch
      %23 = sbr.rel (0) target = $region9
    $region8: #{tpu_custom_call.1} parent=1 // pred_region
      %s25 = ssub.s32 512, 512
      %26 = vsyncadd [#allocation6], %s25
      %s27 = sshll.u32 [#allocation5], 4
      %s28 = int_to_ptr.vmem [resolvable:$true] %s27
      %33 = dma.hbm_to_vmem [thread:$0]  %s1, 512, %s28, [#allocation6], 256, 256, 16
    $region9: #{tpu_custom_call.1} parent=1 // pred_fallthru
      _
    // Predicated region
    $region10: #{tpu_custom_call.1} parent=1 // pred_check
      _
    $region11: #{tpu_custom_call.1} parent=1 // pred_check_branch
      %35 = sbr.rel (0) target = $region13
    $region12: #{tpu_custom_call.1} parent=1 // pred_region
      %36 = dma.done [#allocation3], 512
    $region13: #{tpu_custom_call.1} parent=1 // pred_fallthru
      _
    // Predicated region
    $region14: #{tpu_custom_call.1} parent=1 // pred_check
      _
    $region15: #{tpu_custom_call.1} parent=1 // pred_check_branch
      %38 = sbr.rel (0) target = $region17
    $region16: #{tpu_custom_call.1} parent=1 // pred_region
      %39 = dma.done [#allocation6], 512
    $region17: #{tpu_custom_call.1} parent=1 // pred_fallthru
      _
    %v40 = vld [vmem:[#allocation5] sm:$0xff]
    %v41 = vld [vmem:[#allocation5 + $0x8] sm:$0xff]
    %v42 = vld [vmem:[#allocation5 + $0x10] sm:$0xff]
    %v43 = vld [vmem:[#allocation5 + $0x18] sm:$0xff]
    %v44 = vld [vmem:[#allocation2] sm:$0xff]
    %v45 = vld [vmem:[#allocation2 + $0x8] sm:$0xff]
    %v46 = vld [vmem:[#allocation2 + $0x10] sm:$0xff]
    %v47 = vld [vmem:[#allocation2 + $0x18] sm:$0xff]
    %v48 = vadd.f32 %v40, 1e-12
    %v49 = vadd.f32 %v41, 1e-12
    %v50 = vadd.f32 %v42, 1e-12
    %v51 = vadd.f32 %v43, 1e-12
    %v52 = vlog2.pop %v48
    %v53 = vmul.f32 %v52, 0.6931472
    %v54 = vlog2.pop %v49
    %v55 = vmul.f32 %v54, 0.6931472
    %v56 = vlog2.pop %v50
    %v57 = vmul.f32 %v56, 0.6931472
    %v58 = vlog2.pop %v51
    %v59 = vmul.f32 %v58, 0.6931472
    %v60 = vsub.f32 %v53, %v44
    %v61 = vsub.f32 %v55, %v45
    %v62 = vsub.f32 %v57, %v46
    %v63 = vsub.f32 %v59, %v47
    %v64 = vmul.f32 %v40, %v60
    %v65 = vmul.f32 %v41, %v61
    %v66 = vmul.f32 %v42, %v62
    %v67 = vmul.f32 %v43, %v63
    %v68 = vadd.f32 %v64, %v66
    %v69 = vadd.f32 %v65, %v67
    %70 = vst [vmem:[#allocation7] sm:$0xff] %v68
    %71 = vst [vmem:[#allocation7 + $0x8] sm:$0xff] %v69
    // Predicated region
    $region18: #{tpu_custom_call.1} parent=1 // pred_check
      _
    $region19: #{tpu_custom_call.1} parent=1 // pred_check_branch
      %73 = sbr.rel (0) target = $region21
    $region20: #{tpu_custom_call.1} parent=1 // pred_region
      %s75 = ssub.s32 256, 256
      %76 = vsyncadd [#allocation4], %s75
      %s78 = sshll.u32 [#allocation7], 4
      %s79 = int_to_ptr.vmem [resolvable:$true] %s78
      %81 = dma.vmem_to_hbm [thread:$0]  %s79, 256, %s2, [#allocation4]
    $region21: #{tpu_custom_call.1} parent=1 // pred_fallthru
      _
    // Predicated region
    $region22: #{tpu_custom_call.1} parent=1 // pred_check
      _
    $region23: #{tpu_custom_call.1} parent=1 // pred_check_branch
      %83 = sbr.rel (0) target = $region25
    $region24: #{tpu_custom_call.1} parent=1 // pred_region
      %84 = dma.done [#allocation4], 256
    $region25: #{tpu_custom_call.1} parent=1 // pred_fallthru
      _
    %85 = vsyncpa [#allocation3], 1
    %86 = vsyncpa [#allocation6], 1
    %87 = vsyncpa [#allocation4], 1

</llo_original>
